<compile_context>
chip_gen: v7x
topology: tpu7x:2x2x1
jax: 0.10.0
libtpu: 0.0.40
codegen_flags: <defaults>
</compile_context>

<pallas_src>
import jax
import jax.numpy as jnp
from jax.experimental import pallas as pl
from jax.experimental.pallas import tpu as pltpu


def _folded_linear_kernel(x_ref, wf_ref, bf_ref, o_ref):
    # (TM, 3) x (3, 128) + (1, 128) -> (TM, 128), done as 3 VPU broadcast FMAs.
    x = x_ref[...]                                    # (TM, K)
    wf = wf_ref[...]                                  # (K, 128)
    acc = jnp.broadcast_to(bf_ref[...], (x.shape[0], wf.shape[1]))
    for k in range(wf.shape[0]):                      # K == 3, static unroll
        acc = acc + x[:, k:k + 1] * wf[k:k + 1, :]
    o_ref[...] = acc.astype(o_ref.dtype)


def _round_up(x, n):
    return ((x + n - 1) // n) * n


def mymodel_forward(x, w1, b1, w2, b2, *, tm_max=8192):
    """x: (..., 3) float32.  Returns (..., 128) float32."""
    in_features = w1.shape[1]     # 3
    out_features = w2.shape[0]    # 128

    # Fold the activation-free Linear->Linear once in the wrapper (static
    # weight preprocessing; removes one matmul and the 64-wide intermediate
    # from the kernel). Cast once here, not per grid step.
    wf = (w1.T @ w2.T).astype(x.dtype)                           # (3, 128)
    bf = (b1 @ w2.T + b2).reshape(1, out_features).astype(x.dtype)

    lead_shape = x.shape[:-1]
    m = 1
    for d in lead_shape:
        m *= d
    x2d = x.reshape(m, in_features)

    # Tile the M axis: multiple of 8 (sublane), large enough to amortize the
    # per-step overhead, capped so large inputs yield >= 2 grid steps (v7x
    # megacore sharding of the "parallel" axis).
    tm = min(tm_max, _round_up(pl.cdiv(m, 2), 8))
    tm = max(tm, 8)
    grid = (pl.cdiv(m, tm),)

    cost = pl.CostEstimate(
        flops=2 * m * in_features * out_features,
        bytes_accessed=m * (in_features + out_features) * 4
        + in_features * out_features * 4
        + out_features * 4,
        transcendentals=0,
    )

    out = pl.pallas_call(
        _folded_linear_kernel,
        out_shape=jax.ShapeDtypeStruct((m, out_features), x.dtype),
        grid=grid,
        in_specs=[
            # Input tile marches over M; folded weight / bias stay resident.
            pl.BlockSpec((tm, in_features), lambda i: (i, 0)),
            pl.BlockSpec((in_features, out_features), lambda i: (0, 0)),
            pl.BlockSpec((1, out_features), lambda i: (0, 0)),
        ],
        out_specs=pl.BlockSpec((tm, out_features), lambda i: (i, 0)),
        compiler_params=pltpu.CompilerParams(
            # M tiles are independent -> shard across TCs on v7x megacore.
            dimension_semantics=("parallel",),
            # 32 MiB: fits the tm=8192 double-buffered footprint on v5e while
            # staying within v6e/v7x defaults.
            vmem_limit_bytes=32 * 1024 * 1024,
        ),
        cost_estimate=cost,
    )(x2d, wf, bf)

    return out.reshape(*lead_shape, out_features)


def init_params(key):
    """Deterministic synthetic init matching torch.nn.Linear shapes."""
    k1, k2, k3, k4 = jax.random.split(key, 4)
    # Linear(3, 64): weight (64, 3), bias (64,)
    bound1 = 1.0 / (3 ** 0.5)
    w1 = jax.random.uniform(k1, (64, 3), jnp.float32, -bound1, bound1)
    b1 = jax.random.uniform(k2, (64,), jnp.float32, -bound1, bound1)
    # Linear(64, 128): weight (128, 64), bias (128,)
    bound2 = 1.0 / (64 ** 0.5)
    w2 = jax.random.uniform(k3, (128, 64), jnp.float32, -bound2, bound2)
    b2 = jax.random.uniform(k4, (128,), jnp.float32, -bound2, bound2)
    return w1, b1, w2, b2


if __name__ == "__main__":
    key = jax.random.PRNGKey(0)
    kx, kp = jax.random.split(key)

    # Small input consistent with the forward: last dim must equal 3.
    x = jax.random.normal(kx, (2, 8, 3), jnp.float32)
    w1, b1, w2, b2 = init_params(kp)

    y = mymodel_forward(x, w1, b1, w2, b2)
    y = jax.block_until_ready(y)

    # Reference check in plain JAX (un-folded two-layer composition).
    ref = (x @ w1.T + b1) @ w2.T + b2
    assert y.shape == (2, 8, 128)
    assert jnp.allclose(y, ref, atol=1e-4, rtol=1e-4)

    print("KERNEL_OK")
</pallas_src>

<mosaic_0001>
module attributes {stable_mosaic.version = 11 : i64} {
  func.func @_folded_linear_kernel(%arg0: i32, %arg1: memref<8x3xf32, #tpu.memory_space<vmem>>, %arg2: memref<3x128xf32, #tpu.memory_space<vmem>>, %arg3: memref<1x128xf32, #tpu.memory_space<vmem>>, %arg4: memref<8x128xf32, #tpu.memory_space<vmem>>) attributes {dimension_semantics = [#tpu.dimension_semantics<parallel>], iteration_bounds = array<i64: 2>, scalar_prefetch = 0 : i64, scratch_operands = 0 : i64, tpu.core_type = #tpu.core_type<tc>, window_params = [{transform_indices = @transform_0, window_bounds = array<i64: 8, 3>}, {pipeline_mode = #tpu.pipeline_mode<synchronous>, transform_indices = @transform_1, window_bounds = array<i64: 3, 128>}, {pipeline_mode = #tpu.pipeline_mode<synchronous>, transform_indices = @transform_2, window_bounds = array<i64: 1, 128>}, {transform_indices = @transform_3, window_bounds = array<i64: 8, 128>}]} {
    %c0 = arith.constant 0 : index
    %c0_0 = arith.constant 0 : index
    %0 = vector.load %arg1[%c0, %c0_0] : memref<8x3xf32, #tpu.memory_space<vmem>>, vector<8x3xf32>
    %c0_1 = arith.constant 0 : index
    %c0_2 = arith.constant 0 : index
    %1 = vector.load %arg2[%c0_1, %c0_2] : memref<3x128xf32, #tpu.memory_space<vmem>>, vector<3x128xf32>
    %c0_3 = arith.constant 0 : index
    %c0_4 = arith.constant 0 : index
    %2 = vector.load %arg3[%c0_3, %c0_4] : memref<1x128xf32, #tpu.memory_space<vmem>>, vector<1x128xf32>
    %3 = vector.shape_cast %2 : vector<1x128xf32> to vector<1x128xf32>
    %4 = vector.broadcast %3 : vector<1x128xf32> to vector<8x128xf32>
    %5 = vector.extract_strided_slice %0 {offsets = [0, 0], sizes = [8, 1], strides = [1, 1]} : vector<8x3xf32> to vector<8x1xf32>
    %6 = vector.extract_strided_slice %1 {offsets = [0, 0], sizes = [1, 128], strides = [1, 1]} : vector<3x128xf32> to vector<1x128xf32>
    %7 = vector.broadcast %5 : vector<8x1xf32> to vector<8x128xf32>
    %8 = vector.broadcast %6 : vector<1x128xf32> to vector<8x128xf32>
    %9 = arith.mulf %7, %8 : vector<8x128xf32>
    %10 = arith.addf %4, %9 : vector<8x128xf32>
    %11 = vector.extract_strided_slice %0 {offsets = [0, 1], sizes = [8, 1], strides = [1, 1]} : vector<8x3xf32> to vector<8x1xf32>
    %12 = vector.extract_strided_slice %1 {offsets = [1, 0], sizes = [1, 128], strides = [1, 1]} : vector<3x128xf32> to vector<1x128xf32>
    %13 = vector.broadcast %11 : vector<8x1xf32> to vector<8x128xf32>
    %14 = vector.broadcast %12 : vector<1x128xf32> to vector<8x128xf32>
    %15 = arith.mulf %13, %14 : vector<8x128xf32>
    %16 = arith.addf %10, %15 : vector<8x128xf32>
    %17 = vector.extract_strided_slice %0 {offsets = [0, 2], sizes = [8, 1], strides = [1, 1]} : vector<8x3xf32> to vector<8x1xf32>
    %18 = vector.extract_strided_slice %1 {offsets = [2, 0], sizes = [1, 128], strides = [1, 1]} : vector<3x128xf32> to vector<1x128xf32>
    %19 = vector.broadcast %17 : vector<8x1xf32> to vector<8x128xf32>
    %20 = vector.broadcast %18 : vector<1x128xf32> to vector<8x128xf32>
    %21 = arith.mulf %19, %20 : vector<8x128xf32>
    %22 = arith.addf %16, %21 : vector<8x128xf32>
    %c0_5 = arith.constant 0 : index
    %c0_6 = arith.constant 0 : index
    %23 = vector.load %arg4[%c0_5, %c0_6] : memref<8x128xf32, #tpu.memory_space<vmem>>, vector<8x128xf32>
    tpu.vector_store %arg4[%c0_5, %c0_6], %22 {strides = array<i32>} : memref<8x128xf32, #tpu.memory_space<vmem>>, vector<8x128xf32>,
    return
  }
  func.func @transform_0(%arg0: i32) -> (i32, i32) {
    %c0_i32 = arith.constant 0 : i32
    %c0_i32_0 = arith.constant 0 : i32
    return %arg0, %c0_i32 : i32, i32
  }
  func.func @transform_1(%arg0: i32) -> (i32, i32) {
    %c0_i32 = arith.constant 0 : i32
    %c0_i32_0 = arith.constant 0 : i32
    %c0_i32_1 = arith.constant 0 : i32
    return %c0_i32, %c0_i32_0 : i32, i32
  }
  func.func @transform_2(%arg0: i32) -> (i32, i32) {
    %c0_i32 = arith.constant 0 : i32
    %c0_i32_0 = arith.constant 0 : i32
    %c0_i32_1 = arith.constant 0 : i32
    return %c0_i32, %c0_i32_0 : i32, i32
  }
  func.func @transform_3(%arg0: i32) -> (i32, i32) {
    %c0_i32 = arith.constant 0 : i32
    %c0_i32_0 = arith.constant 0 : i32
    return %arg0, %c0_i32 : i32, i32
  }
}

</mosaic_0001>

<llo_original>
// kernel: tpu_custom_call.1
$region0: #{tpu_custom_call.1}
  #allocation0 [shape = 'u32[]', space=smem, size = 0x4, offset = 0x4, fixed_abs, tag = 'smem constant byte address 0x4 - core index']
  #allocation1 [shape = 'u32[144,128]{1,0:T(1,128)}', space=vmem, size = 0x12000, scoped, tag = 'internal scratch']
  %s0 = inlined_call_operand.vmem [shape: f32[16,3], index: 0, kind: input, shape index: {}]
  %s1 = inlined_call_operand.vmem [shape: f32[3,128], index: 1, kind: input, shape index: {}]
  %s2 = inlined_call_operand.vmem [shape: f32[1,128], index: 2, kind: input, shape index: {}]
  %s3 = inlined_call_operand.hbm [shape: f32[16,128], index: 3, kind: output, shape index: {}]
  %s4 = sld [smem:[#allocation0]]
  $region45: #{tpu_custom_call.1} parent=0
    _
  %s6 = ssub.s32 1, %s4
  %s7 = scalar_select 0, %s6, %s4
  $region1: #{tpu_custom_call.1} parent=0
    #allocation2 [shape = 'u8[8192]{0}', space=vmem, size = 0x2000, scoped, tag = 'output window, operand 0']
    #allocation3 [shape = 's32[2]{0}', space=sflag, size = 0x8, scoped, tag = 'scoped memory for tpu_custom_call.1']
    %8 = vsyncpa [#allocation3], 0
    %s9 = scalar_lea.sflag [#allocation3], 1
    %10 = vsyncpa %s9, 0
    loop: start=0, step=1, limit=4
    $region2: #{tpu_custom_call.1} parent=1 // loop_pre_header
      _
    $region3: #{tpu_custom_call.1} parent=1 // loop_header
      %s12 = sphi 0, %s16
      %p13 = scmp.ge.s32.totalorder %s12, 4
      %s22 = sphi 0, %s24
      %s25 = sphi 0, %s22
      %s26 = sphi 0, %s25
      %s42 = sphi 0, %s26
      %s46 = sphi 0, %s46
      %s48 = sphi 0, %s46
      %s49 = sphi 0, %s48
      %s63 = sphi 0, %s49
      %s67 = sphi 0, %s67
      %s69 = sphi 0, %s67
      %s70 = sphi 0, %s69
      %s84 = sphi 0, %s70
      %s90 = sphi 0, %s92
      %s93 = sphi 0, %s90
      %s94 = sphi 0, %s93
      %s110 = sphi 0, %s94
    $region4: #{tpu_custom_call.1} parent=1 // loop_header_branch
      %15 = sbr.rel (%p13) target = $region8
    $region5: #{tpu_custom_call.1} parent=1 // loop_body
      %s17 = ssub.s32 %s12, 1
      %s18 = ssub.s32 %s12, 2
      %s19 = sadd.s32 %s12, 1
      %s20 = ssub.s32 %s12, %s19
      %p21 = scmp.eq.s32.totalorder %s20, 0
      %s23 = sadd.s32 %s22, 1
      %s24 = scalar_select %p21, %s22, %s23
      %p27 = pneg %p21
      %p28 = scmp.eq.s32.totalorder %s12, 1
      %p29 = por %p27, %p28
      %p30 = scmp.ne.s32.totalorder %s22, %s25
      %p31 = scmp.eq.s32.totalorder %s12, 0
      %p32 = por %p30, %p31
      %p33 = scmp.ne.s32.totalorder %s22, %s25
      %p34 = scmp.eq.s32.totalorder %s17, 1
      %p35 = por %p33, %p34
      %p36 = scmp.ne.s32.totalorder %s25, %s26
      %p37 = scmp.eq.s32.totalorder %s17, 0
      %p38 = por %p36, %p37
      %p39 = scmp.ne.s32.totalorder %s25, %s26
      %p40 = scmp.eq.s32.totalorder %s18, 1
      %p41 = por %p39, %p40
      %p43 = scmp.ne.s32.totalorder %s26, %s42
      %p44 = scmp.eq.s32.totalorder %s18, 0
      %p45 = por %p43, %p44
      %s47 = sadd.s32 %s46, 1
      %p50 = scmp.eq.s32.totalorder %s12, 1
      %p51 = scmp.ne.s32.totalorder %s46, %s48
      %p52 = scmp.eq.s32.totalorder %s12, 0
      %p53 = por %p51, %p52
      %p54 = scmp.ne.s32.totalorder %s46, %s48
      %p55 = scmp.eq.s32.totalorder %s17, 1
      %p56 = por %p54, %p55
      %p57 = scmp.ne.s32.totalorder %s48, %s49
      %p58 = scmp.eq.s32.totalorder %s17, 0
      %p59 = por %p57, %p58
      %p60 = scmp.ne.s32.totalorder %s48, %s49
      %p61 = scmp.eq.s32.totalorder %s18, 1
      %p62 = por %p60, %p61
      %p64 = scmp.ne.s32.totalorder %s49, %s63
      %p65 = scmp.eq.s32.totalorder %s18, 0
      %p66 = por %p64, %p65
      %s68 = sadd.s32 %s67, 1
      %p71 = scmp.eq.s32.totalorder %s12, 1
      %p72 = scmp.ne.s32.totalorder %s67, %s69
      %p73 = scmp.eq.s32.totalorder %s12, 0
      %p74 = por %p72, %p73
      %p75 = scmp.ne.s32.totalorder %s67, %s69
      %p76 = scmp.eq.s32.totalorder %s17, 1
      %p77 = por %p75, %p76
      %p78 = scmp.ne.s32.totalorder %s69, %s70
      %p79 = scmp.eq.s32.totalorder %s17, 0
      %p80 = por %p78, %p79
      %p81 = scmp.ne.s32.totalorder %s69, %s70
      %p82 = scmp.eq.s32.totalorder %s18, 1
      %p83 = por %p81, %p82
      %p85 = scmp.ne.s32.totalorder %s70, %s84
      %p86 = scmp.eq.s32.totalorder %s18, 0
      %p87 = por %p85, %p86
      %s88 = ssub.s32 %s12, %s19
      %p89 = scmp.eq.s32.totalorder %s88, 0
      %s91 = sadd.s32 %s90, 1
      %s92 = scalar_select %p89, %s90, %s91
      %p95 = pneg %p89
      %p96 = scmp.eq.s32.totalorder %s12, 1
      %p97 = por %p95, %p96
      %p98 = scmp.ne.s32.totalorder %s90, %s93
      %p99 = scmp.eq.s32.totalorder %s12, 0
      %p100 = por %p98, %p99
      %p101 = scmp.ne.s32.totalorder %s90, %s93
      %p102 = scmp.eq.s32.totalorder %s17, 1
      %p103 = por %p101, %p102
      %p104 = scmp.ne.s32.totalorder %s93, %s94
      %p105 = scmp.eq.s32.totalorder %s17, 0
      %p106 = por %p104, %p105
      %p107 = scmp.ne.s32.totalorder %s93, %s94
      %p108 = scmp.eq.s32.totalorder %s18, 1
      %p109 = por %p107, %p108
      %p111 = scmp.ne.s32.totalorder %s94, %s110
      %p112 = scmp.eq.s32.totalorder %s18, 0
      %p113 = por %p111, %p112
      %p114 = scmp.le.s32.totalorder 1, %s12
      %p115 = scmp.lt.s32.totalorder %s12, 3
      %p116 = pnand %p114, %p115
      %p117 = pneg %p116
      // Predicated region
      $region9: #{tpu_custom_call.1} parent=5 // pred_check
        _
      $region10: #{tpu_custom_call.1} parent=5 // pred_check_branch
        %119 = sbr.rel (%p116) target = $region12
      $region11: #{tpu_custom_call.1} parent=5 // pred_region
        %s120 = ssub.s32 %s12, 1
        // Predicated region
        $region13: #{tpu_custom_call.1} parent=11 // pred_check
          %p121 = pneg %p59
        $region14: #{tpu_custom_call.1} parent=11 // pred_check_branch
          %123 = sbr.rel (%p121) target = $region16
        $region15: #{tpu_custom_call.1} parent=11 // pred_region
          _
        $region16: #{tpu_custom_call.1} parent=11 // pred_fallthru
          _
        // Predicated region
        $region17: #{tpu_custom_call.1} parent=11 // pred_check
          %p124 = pneg %p80
        $region18: #{tpu_custom_call.1} parent=11 // pred_check_branch
          %126 = sbr.rel (%p124) target = $region20
        $region19: #{tpu_custom_call.1} parent=11 // pred_region
          _
        $region20: #{tpu_custom_call.1} parent=11 // pred_fallthru
          _
      $region12: #{tpu_custom_call.1} parent=5 // pred_fallthru
        _
      %p127 = scmp.lt.s32.totalorder %s12, 2
      // Predicated region
      $region21: #{tpu_custom_call.1} parent=5 // pred_check
        %p128 = pneg %p127
      $region22: #{tpu_custom_call.1} parent=5 // pred_check_branch
        %130 = sbr.rel (%p128) target = $region24
      $region23: #{tpu_custom_call.1} parent=5 // pred_region
        // Predicated region
        $region25: #{tpu_custom_call.1} parent=23 // pred_check
          %p131 = pneg %p32
        $region26: #{tpu_custom_call.1} parent=23 // pred_check_branch
          %133 = sbr.rel (%p131) target = $region28
        $region27: #{tpu_custom_call.1} parent=23 // pred_region
          %p134 = scmp.lt.s32.totalorder %s12, 1
          %s135 = scalar_select %p134, %s12, 1
          %s136 = smul.addr %s135, 8
          %s137 = scalar_lea.vmem %s0, %s136
        $region28: #{tpu_custom_call.1} parent=23 // pred_fallthru
          _
      $region24: #{tpu_custom_call.1} parent=5 // pred_fallthru
        _
      %p138 = scmp.le.s32.totalorder 1, %s12
      %p139 = scmp.lt.s32.totalorder %s12, 3
      %p140 = pnand %p138, %p139
      %p141 = pneg %p140
      // Predicated region
      $region29: #{tpu_custom_call.1} parent=5 // pred_check
        _
      $region30: #{tpu_custom_call.1} parent=5 // pred_check_branch
        %143 = sbr.rel (%p140) target = $region32
      $region31: #{tpu_custom_call.1} parent=5 // pred_region
        %s144 = ssub.s32 %s12, 1
        %p145 = scmp.lt.s32.totalorder %s17, 1
        %s146 = scalar_select %p145, %s17, 1
        %s147 = smul.addr %s146, 8
        %s148 = scalar_lea.vmem %s0, %s147
        %p149 = pneg %p38
        %p150 = pneg %p35
        %p151 = pneg %p59
        %p152 = pneg %p56
        %p153 = pneg %p80
        %p154 = pneg %p77
        %p155 = pneg %p106
        %p156 = pneg %p103
        %s157 = sand.u32 %s93, 1
        %s158 = scalar_lea.sflag [#allocation3], %s157
        %s159 = sand.u32 %s93, 1
        %s160 = smul.addr %s159, 8
        %s161 = scalar_lea.vmem [#allocation2], %s160
        %p162 = scmp.lt.s32.totalorder %s17, 1
        %s163 = scalar_select %p162, %s17, 1
        %s164 = smul.addr %s163, 8
        %s165 = scalar_lea.vmem %s0, %s164
        %v166 = vld [vmem:[%s165] sm:$0xff]
        %v167 = vld [vmem:[%s1] sm:$0x7]
        %v168 = vld [vmem:[%s2] sm:$0x1]
        %v170 = vlaneseq
        %v171 = vshrl.u32 %v170, 7
        %v172 = vsub.s32 0, %v171
        %v173 = vrot.slane %v168, %v172
        %176 = vset.pattern.permute.xlu0 0
        %177 = vperm.xlu0 %176, %v166
        %v178 = vpop.permute.xlu0 %177
        %v180 = vlaneseq
        %v181 = vshrl.u32 %v180, 7
        %v182 = vsub.s32 0, %v181
        %v183 = vrot.slane %v167, %v182
        %v184 = vmul.f32 %v178, %v183
        %v185 = vadd.f32 %v173, %v184
        %186 = vset.pattern.permute.xlu0 1
        %187 = vperm.xlu0 %186, %v166
        %v188 = vpop.permute.xlu0 %187
        %v190 = vlaneseq
        %v191 = vshrl.u32 %v190, 7
        %v192 = vsub.s32 1, %v191
        %v193 = vrot.slane %v167, %v192
        %v194 = vmul.f32 %v188, %v193
        %v195 = vadd.f32 %v185, %v194
        %196 = vset.pattern.permute.xlu0 2
        %197 = vperm.xlu0 %196, %v166
        %v198 = vpop.permute.xlu0 %197
        %v200 = vlaneseq
        %v201 = vshrl.u32 %v200, 7
        %v202 = vsub.s32 2, %v201
        %v203 = vrot.slane %v167, %v202
        %v204 = vmul.f32 %v198, %v203
        %v205 = vadd.f32 %v195, %v204
        %206 = vst [vmem:[%s161] sm:$0xff] %v205
        %s207 = sand.u32 %s93, 1
        %s208 = scalar_lea.sflag [#allocation3], %s207
        %s209 = sand.u32 %s93, 1
        %s210 = smul.addr %s209, 8
        %s211 = scalar_lea.vmem [#allocation2], %s210
        // Predicated region
        $region33: #{tpu_custom_call.1} parent=31 // pred_check
          %p212 = pneg %p103
        $region34: #{tpu_custom_call.1} parent=31 // pred_check_branch
          %214 = sbr.rel (%p212) target = $region36
        $region35: #{tpu_custom_call.1} parent=31 // pred_region
          %s216 = ssub.s32 128, 128
          %217 = vsyncadd %s208, %s216
          %s218 = smul.addr %s17, 128
          %s219 = scalar_lea.hbm %s3, %s218
          %s221 = sshll.u32 %s211, 4
          %s222 = int_to_ptr.vmem [resolvable:$true] %s221
          %224 = dma.vmem_to_hbm [thread:$0]  %s222, 128, %s219, %s208
        $region36: #{tpu_custom_call.1} parent=31 // pred_fallthru
          _
      $region32: #{tpu_custom_call.1} parent=5 // pred_fallthru
        _
      %p225 = scmp.le.s32.totalorder 2, %s12
      // Predicated region
      $region37: #{tpu_custom_call.1} parent=5 // pred_check
        %p226 = pneg %p225
      $region38: #{tpu_custom_call.1} parent=5 // pred_check_branch
        %228 = sbr.rel (%p226) target = $region40
      $region39: #{tpu_custom_call.1} parent=5 // pred_region
        %s229 = ssub.s32 %s12, 2
        // Predicated region
        $region41: #{tpu_custom_call.1} parent=39 // pred_check
          %p230 = pneg %p109
        $region42: #{tpu_custom_call.1} parent=39 // pred_check_branch
          %232 = sbr.rel (%p230) target = $region44
        $region43: #{tpu_custom_call.1} parent=39 // pred_region
          %s233 = sand.u32 %s94, 1
          %s234 = scalar_lea.sflag [#allocation3], %s233
          %s235 = sand.u32 %s94, 1
          %s236 = smul.addr %s235, 8
          %s237 = scalar_lea.vmem [#allocation2], %s236
          %238 = dma.done %s234, 128
        $region44: #{tpu_custom_call.1} parent=39 // pred_fallthru
          _
      $region40: #{tpu_custom_call.1} parent=5 // pred_fallthru
        _
    $region6: #{tpu_custom_call.1} parent=1 // loop_footer
      %s16 = sadd.s32 1, %s12
    $region7: #{tpu_custom_call.1} parent=1 // loop_footer_branch
      %11 = sbr.rel target = $region3
    $region8: #{tpu_custom_call.1} parent=1 // loop_exit
      _
    %239 = vsyncpa [#allocation3], 1
    %s240 = scalar_lea.sflag [#allocation3], 1
    %241 = vsyncpa %s240, 1

</llo_original>
